<compile_context>
chip_gen: v7x
topology: tpu7x:2x2x1
jax: 0.10.0
libtpu: 0.0.40
codegen_flags: <defaults>
</compile_context>

<pallas_src>
from functools import partial
import math

import jax
import jax.numpy as jnp
from jax.experimental import pallas as pl
from jax.experimental.pallas import tpu as pltpu

_INV_SQRT2 = 1.0 / math.sqrt(2.0)  # Python constant -- no tracing involved.


def convblock_kernel(x_ref, w_ref, m_ref, o_ref, patches_ref, *,
                     nb, cin, h, w, eps):
    # x_ref:       (Nb, Cin, (H+2)*W + 2)  bf16  height-padded, flattened image
    # w_ref:       (Cout, 9*Cin)           bf16
    # m_ref:       (2, H*W)                bf16  width-edge masks (left, right)
    # o_ref:       (Nb, Cout, H*W)         f32   lane-dense output
    # patches_ref: (9*Cin, Nb*H*W)         bf16  VMEM scratch (im2col in VMEM)
    hw = h * w
    mask_l = m_ref[0:1, :]   # zero where w == 0      (for kj == 0 taps)
    mask_r = m_ref[1:2, :]   # zero where w == W - 1  (for kj == 2 taps)

    # Build the patch matrix from shifted lane windows (no HBM traffic here).
    for b in range(nb):                      # nb is small & static -> unrolled
        xb = x_ref[b]                        # (Cin, (H+2)*W + 2)
        for t in range(9):
            ki, kj = t // 3, t % 3
            start = ki * w + kj              # contiguous window per tap
            slab = xb[:, start:start + hw]   # (Cin, H*W)
            if kj == 0:
                slab = slab * mask_l
            elif kj == 2:
                slab = slab * mask_r
            patches_ref[pl.ds(t * cin, cin), pl.ds(b * hw, hw)] = slab

    # One MXU matmul for the whole batch block; accumulate in f32.
    acc = jnp.dot(w_ref[...], patches_ref[...],
                  preferred_element_type=jnp.float32)       # (Cout, Nb*H*W)

    # InstanceNorm2d(affine=False) + exact GELU, per image (one-pass stats).
    # NOTE: the conv bias is omitted on purpose -- the mean subtraction below
    # cancels any per-channel constant exactly.
    for b in range(nb):
        a = acc[:, b * hw:(b + 1) * hw]                      # (Cout, H*W) f32
        mean = jnp.mean(a, axis=1, keepdims=True)
        var = jnp.mean(a * a, axis=1, keepdims=True) - mean * mean
        y = (a - mean) * jax.lax.rsqrt(var + eps)
        g = 0.5 * y * (1.0 + jax.lax.erf(y * _INV_SQRT2))    # exact GELU
        o_ref[b] = g.astype(o_ref.dtype)


def _pick_batch_block(n):
    # Coarsen the grid (amortize ~0.35us/step) but keep >= 2 grid steps when
    # N >= 2 so both v7x TensorCores get work; block must divide N.
    if n <= 2:
        return 1
    for nb in range(min(8, n // 2), 0, -1):
        if n % nb == 0:
            return nb
    return 1


def conv_block(x_nchw, weight, bias=None, *, eps=1e-5, batch_block=None):
    """x_nchw: (N, Cin, H, W); weight: (Cout, Cin, 3, 3); bias: (Cout,) or None."""
    N, Cin, H, W = x_nchw.shape
    Cout = weight.shape[0]
    K = 9 * Cin
    HW = H * W
    Lf = (H + 2) * W + 2            # flat length: height pad + 1-elem guards

    if batch_block is None:
        batch_block = _pick_batch_block(N)
    assert N % batch_block == 0, (N, batch_block)

    # Bias is accepted to mirror the PyTorch module, but InstanceNorm's mean
    # subtraction cancels it exactly, so it never reaches the kernel.
    del bias

    # Height-pad (one zero row above/below), flatten spatial dims (cast to bf16
    # FIRST to halve the bytes XLA materializes), and add a one-element guard
    # at each end so every 3x3 tap is an in-bounds contiguous lane window.
    xf = jnp.pad(x_nchw.astype(jnp.bfloat16), ((0, 0), (0, 0), (1, 1), (0, 0)))
    xf = xf.reshape(N, Cin, (H + 2) * W)
    xf = jnp.pad(xf, ((0, 0), (0, 0), (1, 1)))               # (N, Cin, Lf)

    # weight[o, c, ki, kj] -> w_mat[o, (ki*3 + kj)*Cin + c]  (matches patch order)
    w_mat = jnp.transpose(weight, (0, 2, 3, 1)).reshape(Cout, K).astype(jnp.bfloat16)

    # Width-edge masks (width axis is not zero-padded in the flat layout).
    col = jnp.arange(HW, dtype=jnp.int32) % W
    edge_masks = jnp.stack([col != 0, col != W - 1]).astype(jnp.bfloat16)  # (2, HW)

    kernel = partial(convblock_kernel, nb=batch_block, cin=Cin, h=H, w=W, eps=eps)

    # Raise the scoped-VMEM limit only if the working set needs it; stay under
    # v7x's 64 MiB physical VMEM.
    blk_bytes = (batch_block * Cin * Lf * 2 + Cout * K * 2 + 2 * HW * 2
                 + batch_block * Cout * HW * 4)
    vmem_need = 2 * blk_bytes + K * batch_block * HW * 2
    vmem_limit = (int(min(1.5 * vmem_need, 60 * 2**20))
                  if vmem_need > 24 * 2**20 else None)

    out = pl.pallas_call(
        kernel,
        out_shape=jax.ShapeDtypeStruct((N, Cout, HW), jnp.float32),
        grid=(N // batch_block,),
        in_specs=[
            pl.BlockSpec((batch_block, Cin, Lf), lambda n: (n, 0, 0)),
            pl.BlockSpec((Cout, K), lambda n: (0, 0)),
            pl.BlockSpec((2, HW), lambda n: (0, 0)),
        ],
        out_specs=pl.BlockSpec((batch_block, Cout, HW), lambda n: (n, 0, 0)),
        scratch_shapes=[pltpu.VMEM((K, batch_block * HW), jnp.bfloat16)],
        compiler_params=pltpu.CompilerParams(
            dimension_semantics=("parallel",),
            vmem_limit_bytes=vmem_limit),
    )(xf, w_mat, edge_masks)

    # (N, Cout, H*W) reshapes straight to PyTorch NCHW -- no transpose, no slice.
    return out.reshape(N, Cout, H, W)


def reference(x, weight, bias, eps=1e-5):
    y = jax.lax.conv_general_dilated(
        x, weight, window_strides=(1, 1), padding=((1, 1), (1, 1)),
        dimension_numbers=("NCHW", "OIHW", "NCHW"))
    y = y + bias[None, :, None, None]          # bias kept here on purpose
    mean = jnp.mean(y, axis=(2, 3), keepdims=True)
    var = jnp.var(y, axis=(2, 3), keepdims=True)
    y = (y - mean) * jax.lax.rsqrt(var + eps)
    return 0.5 * y * (1.0 + jax.lax.erf(y / jnp.sqrt(2.0)))


if __name__ == "__main__":
    N, Cin, Cout, H, W = 2, 4, 8, 16, 16

    key = jax.random.PRNGKey(0)
    kx, kw, kb = jax.random.split(key, 3)
    x = jax.random.normal(kx, (N, Cin, H, W), dtype=jnp.float32)
    weight = 0.1 * jax.random.normal(kw, (Cout, Cin, 3, 3), dtype=jnp.float32)
    bias = 0.1 * jax.random.normal(kb, (Cout,), dtype=jnp.float32)

    out = jax.block_until_ready(conv_block(x, weight, bias))
    ref = jax.block_until_ready(reference(x, weight, bias))

    assert out.shape == (N, Cout, H, W)
    # Matmul operands are bf16; compare against the f32 reference (which also
    # includes the bias the kernel drops) with a correspondingly loose tolerance.
    max_err = float(jnp.max(jnp.abs(out - ref)))
    assert max_err < 5e-2, max_err

    print("KERNEL_OK")
</pallas_src>

<mosaic_0001>
module attributes {stable_mosaic.version = 11 : i64} {
  func.func @convblock_kernel(%arg0: i32, %arg1: memref<1x4x290xbf16, #tpu.memory_space<vmem>>, %arg2: memref<8x36xbf16, #tpu.memory_space<vmem>>, %arg3: memref<2x256xbf16, #tpu.memory_space<vmem>>, %arg4: memref<1x8x256xf32, #tpu.memory_space<vmem>>, %arg5: memref<36x256xbf16, #tpu.memory_space<vmem>>) attributes {dimension_semantics = [#tpu.dimension_semantics<parallel>], iteration_bounds = array<i64: 2>, scalar_prefetch = 0 : i64, scratch_operands = 1 : i64, tpu.core_type = #tpu.core_type<tc>, window_params = [{transform_indices = @transform_0, window_bounds = array<i64: 1, 4, 290>}, {pipeline_mode = #tpu.pipeline_mode<synchronous>, transform_indices = @transform_1, window_bounds = array<i64: 8, 36>}, {pipeline_mode = #tpu.pipeline_mode<synchronous>, transform_indices = @transform_2, window_bounds = array<i64: 2, 256>}, {transform_indices = @transform_3, window_bounds = array<i64: 1, 8, 256>}]} {
    %c0 = arith.constant 0 : index
    %c0_0 = arith.constant 0 : index
    %0 = vector.load %arg3[%c0, %c0_0] : memref<2x256xbf16, #tpu.memory_space<vmem>>, vector<1x256xbf16>
    %c1 = arith.constant 1 : index
    %c0_1 = arith.constant 0 : index
    %1 = vector.load %arg3[%c1, %c0_1] : memref<2x256xbf16, #tpu.memory_space<vmem>>, vector<1x256xbf16>
    %c0_2 = arith.constant 0 : index
    %c0_3 = arith.constant 0 : index
    %c0_4 = arith.constant 0 : index
    %2 = vector.load %arg1[%c0_2, %c0_3, %c0_4] : memref<1x4x290xbf16, #tpu.memory_space<vmem>>, vector<1x4x290xbf16>
    %3 = vector.shape_cast %2 : vector<1x4x290xbf16> to vector<4x290xbf16>
    %4 = vector.extract_strided_slice %3 {offsets = [0, 0], sizes = [4, 256], strides = [1, 1]} : vector<4x290xbf16> to vector<4x256xbf16>
    %5 = vector.broadcast %0 : vector<1x256xbf16> to vector<4x256xbf16>
    %6 = arith.mulf %4, %5 : vector<4x256xbf16>
    %c0_5 = arith.constant 0 : index
    %c0_6 = arith.constant 0 : index
    %7 = vector.load %arg5[%c0_5, %c0_6] : memref<36x256xbf16, #tpu.memory_space<vmem>>, vector<4x256xbf16>
    tpu.vector_store %arg5[%c0_5, %c0_6], %6 {strides = array<i32>} : memref<36x256xbf16, #tpu.memory_space<vmem>>, vector<4x256xbf16>,
    %8 = vector.extract_strided_slice %3 {offsets = [0, 1], sizes = [4, 256], strides = [1, 1]} : vector<4x290xbf16> to vector<4x256xbf16>
    %c4 = arith.constant 4 : index
    %c0_7 = arith.constant 0 : index
    %9 = vector.load %arg5[%c4, %c0_7] : memref<36x256xbf16, #tpu.memory_space<vmem>>, vector<4x256xbf16>
    tpu.vector_store %arg5[%c4, %c0_7], %8 {strides = array<i32>} : memref<36x256xbf16, #tpu.memory_space<vmem>>, vector<4x256xbf16>,
    %10 = vector.extract_strided_slice %3 {offsets = [0, 2], sizes = [4, 256], strides = [1, 1]} : vector<4x290xbf16> to vector<4x256xbf16>
    %11 = vector.broadcast %1 : vector<1x256xbf16> to vector<4x256xbf16>
    %12 = arith.mulf %10, %11 : vector<4x256xbf16>
    %c8 = arith.constant 8 : index
    %c0_8 = arith.constant 0 : index
    %13 = vector.load %arg5[%c8, %c0_8] : memref<36x256xbf16, #tpu.memory_space<vmem>>, vector<4x256xbf16>
    tpu.vector_store %arg5[%c8, %c0_8], %12 {strides = array<i32>} : memref<36x256xbf16, #tpu.memory_space<vmem>>, vector<4x256xbf16>,
    %14 = vector.extract_strided_slice %3 {offsets = [0, 16], sizes = [4, 256], strides = [1, 1]} : vector<4x290xbf16> to vector<4x256xbf16>
    %15 = vector.broadcast %0 : vector<1x256xbf16> to vector<4x256xbf16>
    %16 = arith.mulf %14, %15 : vector<4x256xbf16>
    %c12 = arith.constant 12 : index
    %c0_9 = arith.constant 0 : index
    %17 = vector.load %arg5[%c12, %c0_9] : memref<36x256xbf16, #tpu.memory_space<vmem>>, vector<4x256xbf16>
    tpu.vector_store %arg5[%c12, %c0_9], %16 {strides = array<i32>} : memref<36x256xbf16, #tpu.memory_space<vmem>>, vector<4x256xbf16>,
    %18 = vector.extract_strided_slice %3 {offsets = [0, 17], sizes = [4, 256], strides = [1, 1]} : vector<4x290xbf16> to vector<4x256xbf16>
    %c16 = arith.constant 16 : index
    %c0_10 = arith.constant 0 : index
    %19 = vector.load %arg5[%c16, %c0_10] : memref<36x256xbf16, #tpu.memory_space<vmem>>, vector<4x256xbf16>
    tpu.vector_store %arg5[%c16, %c0_10], %18 {strides = array<i32>} : memref<36x256xbf16, #tpu.memory_space<vmem>>, vector<4x256xbf16>,
    %20 = vector.extract_strided_slice %3 {offsets = [0, 18], sizes = [4, 256], strides = [1, 1]} : vector<4x290xbf16> to vector<4x256xbf16>
    %21 = vector.broadcast %1 : vector<1x256xbf16> to vector<4x256xbf16>
    %22 = arith.mulf %20, %21 : vector<4x256xbf16>
    %c20 = arith.constant 20 : index
    %c0_11 = arith.constant 0 : index
    %23 = vector.load %arg5[%c20, %c0_11] : memref<36x256xbf16, #tpu.memory_space<vmem>>, vector<4x256xbf16>
    tpu.vector_store %arg5[%c20, %c0_11], %22 {strides = array<i32>} : memref<36x256xbf16, #tpu.memory_space<vmem>>, vector<4x256xbf16>,
    %24 = vector.extract_strided_slice %3 {offsets = [0, 32], sizes = [4, 256], strides = [1, 1]} : vector<4x290xbf16> to vector<4x256xbf16>
    %25 = vector.broadcast %0 : vector<1x256xbf16> to vector<4x256xbf16>
    %26 = arith.mulf %24, %25 : vector<4x256xbf16>
    %c24 = arith.constant 24 : index
    %c0_12 = arith.constant 0 : index
    %27 = vector.load %arg5[%c24, %c0_12] : memref<36x256xbf16, #tpu.memory_space<vmem>>, vector<4x256xbf16>
    tpu.vector_store %arg5[%c24, %c0_12], %26 {strides = array<i32>} : memref<36x256xbf16, #tpu.memory_space<vmem>>, vector<4x256xbf16>,
    %28 = vector.extract_strided_slice %3 {offsets = [0, 33], sizes = [4, 256], strides = [1, 1]} : vector<4x290xbf16> to vector<4x256xbf16>
    %c28 = arith.constant 28 : index
    %c0_13 = arith.constant 0 : index
    %29 = vector.load %arg5[%c28, %c0_13] : memref<36x256xbf16, #tpu.memory_space<vmem>>, vector<4x256xbf16>
    tpu.vector_store %arg5[%c28, %c0_13], %28 {strides = array<i32>} : memref<36x256xbf16, #tpu.memory_space<vmem>>, vector<4x256xbf16>,
    %30 = vector.extract_strided_slice %3 {offsets = [0, 34], sizes = [4, 256], strides = [1, 1]} : vector<4x290xbf16> to vector<4x256xbf16>
    %31 = vector.broadcast %1 : vector<1x256xbf16> to vector<4x256xbf16>
    %32 = arith.mulf %30, %31 : vector<4x256xbf16>
    %c32 = arith.constant 32 : index
    %c0_14 = arith.constant 0 : index
    %33 = vector.load %arg5[%c32, %c0_14] : memref<36x256xbf16, #tpu.memory_space<vmem>>, vector<4x256xbf16>
    tpu.vector_store %arg5[%c32, %c0_14], %32 {strides = array<i32>} : memref<36x256xbf16, #tpu.memory_space<vmem>>, vector<4x256xbf16>,
    %c0_15 = arith.constant 0 : index
    %c0_16 = arith.constant 0 : index
    %34 = vector.load %arg2[%c0_15, %c0_16] : memref<8x36xbf16, #tpu.memory_space<vmem>>, vector<8x36xbf16>
    %c0_17 = arith.constant 0 : index
    %c0_18 = arith.constant 0 : index
    %35 = vector.load %arg5[%c0_17, %c0_18] : memref<36x256xbf16, #tpu.memory_space<vmem>>, vector<36x256xbf16>
    %cst = arith.constant dense<0.000000e+00> : vector<8x256xf32>
    %36 = tpu.matmul %34, %35, %cst {dimension_numbers = #tpu.dot_dimension_numbers<[1], [0], [0], [1], [0, 0, 1, 1], [], []>} : vector<8x36xbf16>, vector<36x256xbf16>, vector<8x256xf32> -> vector<8x256xf32>
    %cst_19 = arith.constant dense<0.000000e+00> : vector<8xf32>
    %37 = vector.multi_reduction <add>, %36, %cst_19 [1] : vector<8x256xf32> to vector<8xf32>
    %38 = vector.shape_cast %37 : vector<8xf32> to vector<8x1xf32>
    %cst_20 = arith.constant 2.560000e+02 : f32
    %39 = vector.broadcast %cst_20 : f32 to vector<8x1xf32>
    %40 = arith.divf %38, %39 : vector<8x1xf32>
    %41 = arith.mulf %36, %36 : vector<8x256xf32>
    %cst_21 = arith.constant dense<0.000000e+00> : vector<8xf32>
    %42 = vector.multi_reduction <add>, %41, %cst_21 [1] : vector<8x256xf32> to vector<8xf32>
    %43 = vector.shape_cast %42 : vector<8xf32> to vector<8x1xf32>
    %cst_22 = arith.constant 2.560000e+02 : f32
    %44 = vector.broadcast %cst_22 : f32 to vector<8x1xf32>
    %45 = arith.divf %43, %44 : vector<8x1xf32>
    %46 = arith.mulf %40, %40 : vector<8x1xf32>
    %47 = arith.subf %45, %46 : vector<8x1xf32>
    %48 = vector.broadcast %40 : vector<8x1xf32> to vector<8x256xf32>
    %49 = arith.subf %36, %48 : vector<8x256xf32>
    %cst_23 = arith.constant 9.99999974E-6 : f32
    %50 = vector.broadcast %cst_23 : f32 to vector<8x1xf32>
    %51 = arith.addf %47, %50 : vector<8x1xf32>
    %52 = math.rsqrt %51 : vector<8x1xf32>
    %53 = vector.broadcast %52 : vector<8x1xf32> to vector<8x256xf32>
    %54 = arith.mulf %49, %53 : vector<8x256xf32>
    %cst_24 = arith.constant 5.000000e-01 : f32
    %55 = vector.broadcast %cst_24 : f32 to vector<8x256xf32>
    %56 = arith.mulf %55, %54 : vector<8x256xf32>
    %cst_25 = arith.constant 0.707106769 : f32
    %57 = vector.broadcast %cst_25 : f32 to vector<8x256xf32>
    %58 = arith.mulf %54, %57 : vector<8x256xf32>
    %59 = math.erf %58 : vector<8x256xf32>
    %cst_26 = arith.constant 1.000000e+00 : f32
    %60 = vector.broadcast %cst_26 : f32 to vector<8x256xf32>
    %61 = arith.addf %60, %59 : vector<8x256xf32>
    %62 = arith.mulf %56, %61 : vector<8x256xf32>
    %c0_27 = arith.constant 0 : index
    %c0_28 = arith.constant 0 : index
    %c0_29 = arith.constant 0 : index
    %63 = vector.load %arg4[%c0_27, %c0_28, %c0_29] : memref<1x8x256xf32, #tpu.memory_space<vmem>>, vector<1x8x256xf32>
    %64 = vector.shape_cast %63 : vector<1x8x256xf32> to vector<8x256xf32>
    %65 = vector.shape_cast %62 : vector<8x256xf32> to vector<1x8x256xf32>
    tpu.vector_store %arg4[%c0_27, %c0_28, %c0_29], %65 {strides = array<i32>} : memref<1x8x256xf32, #tpu.memory_space<vmem>>, vector<1x8x256xf32>,
    return
  }
  func.func @transform_0(%arg0: i32) -> (i32, i32, i32) {
    %c0_i32 = arith.constant 0 : i32
    %c0_i32_0 = arith.constant 0 : i32
    %c0_i32_1 = arith.constant 0 : i32
    return %arg0, %c0_i32, %c0_i32_0 : i32, i32, i32
  }
  func.func @transform_1(%arg0: i32) -> (i32, i32) {
    %c0_i32 = arith.constant 0 : i32
    %c0_i32_0 = arith.constant 0 : i32
    %c0_i32_1 = arith.constant 0 : i32
    return %c0_i32, %c0_i32_0 : i32, i32
  }
  func.func @transform_2(%arg0: i32) -> (i32, i32) {
    %c0_i32 = arith.constant 0 : i32
    %c0_i32_0 = arith.constant 0 : i32
    %c0_i32_1 = arith.constant 0 : i32
    return %c0_i32, %c0_i32_0 : i32, i32
  }
  func.func @transform_3(%arg0: i32) -> (i32, i32, i32) {
    %c0_i32 = arith.constant 0 : i32
    %c0_i32_0 = arith.constant 0 : i32
    %c0_i32_1 = arith.constant 0 : i32
    return %arg0, %c0_i32, %c0_i32_0 : i32, i32, i32
  }
}

</mosaic_0001>

<llo_original>
// kernel: tpu_custom_call.1
$region0: #{tpu_custom_call.1}
  #allocation0 [shape = 'u32[]', space=smem, size = 0x4, offset = 0x4, fixed_abs, tag = 'smem constant byte address 0x4 - core index']
  #allocation1 [shape = 'u32[144,128]{1,0:T(1,128)}', space=vmem, size = 0x12000, scoped, tag = 'internal scratch']
  #allocation2 [shape = 'bf16[36,256]{1,0:T(8,128)(2,1)}', space=vmem, size = 0x5000, scoped, tag = 'scratch operand']
  %s0 = inlined_call_operand.hbm [shape: bf16[2,4,290], index: 0, kind: input, shape index: {}]
  %s1 = inlined_call_operand.hbm [shape: bf16[8,36], index: 1, kind: input, shape index: {}]
  %s2 = inlined_call_operand.vmem [shape: bf16[2,256], index: 2, kind: input, shape index: {}]
  %s3 = inlined_call_operand.hbm [shape: f32[2,8,256], index: 3, kind: output, shape index: {}]
  %s4 = sld [smem:[#allocation0]]
  $region53: #{tpu_custom_call.1} parent=0
    _
  %s6 = ssub.s32 1, %s4
  %s7 = scalar_select 0, %s6, %s4
  $region1: #{tpu_custom_call.1} parent=0
    #allocation3 [shape = 'u8[6144]{0}', space=vmem, size = 0x1800, scoped, tag = 'input window, operand 0']
    #allocation4 [shape = 's32[2]{0}', space=sflag, size = 0x8, scoped, tag = 'scoped memory for tpu_custom_call.1']
    #allocation5 [shape = 's32[2]{0}', space=sflag, size = 0x8, scoped, tag = 'scoped memory for tpu_custom_call.1']
    #allocation6 [shape = 'u8[2048]{0}', space=vmem, size = 0x800, scoped, tag = 'input window, operand 1, single buffered']
    #allocation7 [shape = 's32[1]{0}', space=sflag, size = 0x4, scoped, tag = 'scoped memory for tpu_custom_call.1']
    #allocation8 [shape = 'u8[16384]{0}', space=vmem, size = 0x4000, scoped, tag = 'output window, operand 0']
    %8 = vsyncpa [#allocation4], 0
    %s9 = scalar_lea.sflag [#allocation4], 1
    %10 = vsyncpa %s9, 0
    %11 = vsyncpa [#allocation7], 0
    %12 = vsyncpa [#allocation5], 0
    %s13 = scalar_lea.sflag [#allocation5], 1
    %14 = vsyncpa %s13, 0
    loop: start=0, step=1, limit=4
    $region2: #{tpu_custom_call.1} parent=1 // loop_pre_header
      _
    $region3: #{tpu_custom_call.1} parent=1 // loop_header
      %s16 = sphi 0, %s20
      %p17 = scmp.ge.s32.totalorder %s16, 4
      %s26 = sphi 0, %s28
      %s29 = sphi 0, %s26
      %s30 = sphi 0, %s29
      %s46 = sphi 0, %s30
      %s50 = sphi 0, %s50
      %s52 = sphi 0, %s50
      %s53 = sphi 0, %s52
      %s67 = sphi 0, %s53
      %s71 = sphi 0, %s71
      %s73 = sphi 0, %s71
      %s74 = sphi 0, %s73
      %s88 = sphi 0, %s74
      %s94 = sphi 0, %s96
      %s97 = sphi 0, %s94
      %s98 = sphi 0, %s97
      %s114 = sphi 0, %s98
    $region4: #{tpu_custom_call.1} parent=1 // loop_header_branch
      %19 = sbr.rel (%p17) target = $region8
    $region5: #{tpu_custom_call.1} parent=1 // loop_body
      %s21 = ssub.s32 %s16, 1
      %s22 = ssub.s32 %s16, 2
      %s23 = sadd.s32 %s16, 1
      %s24 = ssub.s32 %s16, %s23
      %p25 = scmp.eq.s32.totalorder %s24, 0
      %s27 = sadd.s32 %s26, 1
      %s28 = scalar_select %p25, %s26, %s27
      %p31 = pneg %p25
      %p32 = scmp.eq.s32.totalorder %s16, 1
      %p33 = por %p31, %p32
      %p34 = scmp.ne.s32.totalorder %s26, %s29
      %p35 = scmp.eq.s32.totalorder %s16, 0
      %p36 = por %p34, %p35
      %p37 = scmp.ne.s32.totalorder %s26, %s29
      %p38 = scmp.eq.s32.totalorder %s21, 1
      %p39 = por %p37, %p38
      %p40 = scmp.ne.s32.totalorder %s29, %s30
      %p41 = scmp.eq.s32.totalorder %s21, 0
      %p42 = por %p40, %p41
      %p43 = scmp.ne.s32.totalorder %s29, %s30
      %p44 = scmp.eq.s32.totalorder %s22, 1
      %p45 = por %p43, %p44
      %p47 = scmp.ne.s32.totalorder %s30, %s46
      %p48 = scmp.eq.s32.totalorder %s22, 0
      %p49 = por %p47, %p48
      %s51 = sadd.s32 %s50, 1
      %p54 = scmp.eq.s32.totalorder %s16, 1
      %p55 = scmp.ne.s32.totalorder %s50, %s52
      %p56 = scmp.eq.s32.totalorder %s16, 0
      %p57 = por %p55, %p56
      %p58 = scmp.ne.s32.totalorder %s50, %s52
      %p59 = scmp.eq.s32.totalorder %s21, 1
      %p60 = por %p58, %p59
      %p61 = scmp.ne.s32.totalorder %s52, %s53
      %p62 = scmp.eq.s32.totalorder %s21, 0
      %p63 = por %p61, %p62
      %p64 = scmp.ne.s32.totalorder %s52, %s53
      %p65 = scmp.eq.s32.totalorder %s22, 1
      %p66 = por %p64, %p65
      %p68 = scmp.ne.s32.totalorder %s53, %s67
      %p69 = scmp.eq.s32.totalorder %s22, 0
      %p70 = por %p68, %p69
      %s72 = sadd.s32 %s71, 1
      %p75 = scmp.eq.s32.totalorder %s16, 1
      %p76 = scmp.ne.s32.totalorder %s71, %s73
      %p77 = scmp.eq.s32.totalorder %s16, 0
      %p78 = por %p76, %p77
      %p79 = scmp.ne.s32.totalorder %s71, %s73
      %p80 = scmp.eq.s32.totalorder %s21, 1
      %p81 = por %p79, %p80
      %p82 = scmp.ne.s32.totalorder %s73, %s74
      %p83 = scmp.eq.s32.totalorder %s21, 0
      %p84 = por %p82, %p83
      %p85 = scmp.ne.s32.totalorder %s73, %s74
      %p86 = scmp.eq.s32.totalorder %s22, 1
      %p87 = por %p85, %p86
      %p89 = scmp.ne.s32.totalorder %s74, %s88
      %p90 = scmp.eq.s32.totalorder %s22, 0
      %p91 = por %p89, %p90
      %s92 = ssub.s32 %s16, %s23
      %p93 = scmp.eq.s32.totalorder %s92, 0
      %s95 = sadd.s32 %s94, 1
      %s96 = scalar_select %p93, %s94, %s95
      %p99 = pneg %p93
      %p100 = scmp.eq.s32.totalorder %s16, 1
      %p101 = por %p99, %p100
      %p102 = scmp.ne.s32.totalorder %s94, %s97
      %p103 = scmp.eq.s32.totalorder %s16, 0
      %p104 = por %p102, %p103
      %p105 = scmp.ne.s32.totalorder %s94, %s97
      %p106 = scmp.eq.s32.totalorder %s21, 1
      %p107 = por %p105, %p106
      %p108 = scmp.ne.s32.totalorder %s97, %s98
      %p109 = scmp.eq.s32.totalorder %s21, 0
      %p110 = por %p108, %p109
      %p111 = scmp.ne.s32.totalorder %s97, %s98
      %p112 = scmp.eq.s32.totalorder %s22, 1
      %p113 = por %p111, %p112
      %p115 = scmp.ne.s32.totalorder %s98, %s114
      %p116 = scmp.eq.s32.totalorder %s22, 0
      %p117 = por %p115, %p116
      %p118 = scmp.le.s32.totalorder 1, %s16
      %p119 = scmp.lt.s32.totalorder %s16, 3
      %p120 = pnand %p118, %p119
      %p121 = pneg %p120
      // Predicated region
      $region9: #{tpu_custom_call.1} parent=5 // pred_check
        _
      $region10: #{tpu_custom_call.1} parent=5 // pred_check_branch
        %123 = sbr.rel (%p120) target = $region12
      $region11: #{tpu_custom_call.1} parent=5 // pred_region
        %s124 = ssub.s32 %s16, 1
        // Predicated region
        $region13: #{tpu_custom_call.1} parent=11 // pred_check
          %p125 = pneg %p63
        $region14: #{tpu_custom_call.1} parent=11 // pred_check_branch
          %127 = sbr.rel (%p125) target = $region16
        $region15: #{tpu_custom_call.1} parent=11 // pred_region
          %s129 = ssub.s32 64, 64
          %130 = vsyncadd [#allocation7], %s129
          %s132 = sshll.u32 [#allocation6], 4
          %s133 = int_to_ptr.vmem [resolvable:$true] %s132
          %135 = dma.hbm_to_vmem [thread:$0]  %s1, 64, %s133, [#allocation7]
        $region16: #{tpu_custom_call.1} parent=11 // pred_fallthru
          _
        // Predicated region
        $region17: #{tpu_custom_call.1} parent=11 // pred_check
          %p136 = pneg %p84
        $region18: #{tpu_custom_call.1} parent=11 // pred_check_branch
          %138 = sbr.rel (%p136) target = $region20
        $region19: #{tpu_custom_call.1} parent=11 // pred_region
          _
        $region20: #{tpu_custom_call.1} parent=11 // pred_fallthru
          _
      $region12: #{tpu_custom_call.1} parent=5 // pred_fallthru
        _
      %p139 = scmp.lt.s32.totalorder %s16, 2
      // Predicated region
      $region21: #{tpu_custom_call.1} parent=5 // pred_check
        %p140 = pneg %p139
      $region22: #{tpu_custom_call.1} parent=5 // pred_check_branch
        %142 = sbr.rel (%p140) target = $region24
      $region23: #{tpu_custom_call.1} parent=5 // pred_region
        // Predicated region
        $region25: #{tpu_custom_call.1} parent=23 // pred_check
          %p143 = pneg %p36
        $region26: #{tpu_custom_call.1} parent=23 // pred_check_branch
          %145 = sbr.rel (%p143) target = $region28
        $region27: #{tpu_custom_call.1} parent=23 // pred_region
          %s146 = sand.u32 %s26, 1
          %s147 = scalar_lea.sflag [#allocation4], %s146
          %s148 = sand.u32 %s26, 1
          %s149 = smul.addr %s148, 6
          %s150 = scalar_lea.vmem [#allocation3], %s149
          %s152 = ssub.s32 96, 96
          %153 = vsyncadd %s147, %s152
          %s154 = smul.addr %s16, 3
          %s155 = smul.addr %s154, 32
          %s156 = scalar_lea.hbm %s0, %s155
          %s158 = sshll.u32 %s150, 4
          %s159 = int_to_ptr.vmem [resolvable:$true] %s158
          %161 = dma.hbm_to_vmem [thread:$0]  %s156, 96, %s159, %s147
        $region28: #{tpu_custom_call.1} parent=23 // pred_fallthru
          _
      $region24: #{tpu_custom_call.1} parent=5 // pred_fallthru
        _
      %p162 = scmp.le.s32.totalorder 1, %s16
      %p163 = scmp.lt.s32.totalorder %s16, 3
      %p164 = pnand %p162, %p163
      %p165 = pneg %p164
      // Predicated region
      $region29: #{tpu_custom_call.1} parent=5 // pred_check
        _
      $region30: #{tpu_custom_call.1} parent=5 // pred_check_branch
        %167 = sbr.rel (%p164) target = $region32
      $region31: #{tpu_custom_call.1} parent=5 // pred_region
        %s168 = ssub.s32 %s16, 1
        %s169 = sand.u32 %s29, 1
        %s170 = scalar_lea.sflag [#allocation4], %s169
        %s171 = sand.u32 %s29, 1
        %s172 = smul.addr %s171, 6
        %s173 = scalar_lea.vmem [#allocation3], %s172
        // Predicated region
        $region33: #{tpu_custom_call.1} parent=31 // pred_check
          %p174 = pneg %p42
        $region34: #{tpu_custom_call.1} parent=31 // pred_check_branch
          %176 = sbr.rel (%p174) target = $region36
        $region35: #{tpu_custom_call.1} parent=31 // pred_region
          %177 = dma.done %s170, 96
        $region36: #{tpu_custom_call.1} parent=31 // pred_fallthru
          _
        // Predicated region
        $region37: #{tpu_custom_call.1} parent=31 // pred_check
          %p178 = pneg %p63
        $region38: #{tpu_custom_call.1} parent=31 // pred_check_branch
          %180 = sbr.rel (%p178) target = $region40
        $region39: #{tpu_custom_call.1} parent=31 // pred_region
          %181 = dma.done [#allocation7], 64
        $region40: #{tpu_custom_call.1} parent=31 // pred_fallthru
          _
        %s182 = sand.u32 %s29, 1
        %s183 = scalar_lea.sflag [#allocation4], %s182
        %s184 = sand.u32 %s29, 1
        %s185 = smul.addr %s184, 6
        %s186 = scalar_lea.vmem [#allocation3], %s185
        %p187 = pneg %p42
        %p188 = pneg %p39
        %p189 = pneg %p63
        %p190 = pneg %p60
        %p191 = pneg %p84
        %p192 = pneg %p81
        %p193 = pneg %p110
        %p194 = pneg %p107
        %s195 = sand.u32 %s97, 1
        %s196 = scalar_lea.sflag [#allocation5], %s195
        %s197 = sand.u32 %s97, 1
        %s198 = smul.addr %s197, 16
        %s199 = scalar_lea.vmem [#allocation8], %s198
        %v201 = vld [vmem:[%s2] sm:$0x3]
        %v202 = vld [vmem:[%s173] sm:$0x3f]
        %v205 = vunpack.c.l.s4 1966171168
        %v206 = vunpack.c.0.s8 %v205
        %v207 = vlaneseq
        %v208 = vshrl.u32 %v207, 7
        %v209 = vsub.s32 %v206, %v208
        %v210 = vrot.slane %v201, %v209
        %v211 = vcombine.high %v210, %v210
        %v213 = vunpack.c.l.s4 1966171168
        %v214 = vunpack.c.0.s8 %v213
        %v215 = vlaneseq
        %v216 = vshrl.u32 %v215, 7
        %v217 = vsub.s32 %v214, %v216
        %v218 = vrot.slane %v210, %v217
        %v220 = vunpack.c.l.s4 1966171168
        %v221 = vunpack.c.0.s8 %v220
        %v222 = vlaneseq
        %v223 = vshrl.u32 %v222, 7
        %v224 = vsub.s32 %v221, %v223
        %v225 = vrot.slane %v211, %v224
        %v227 = vpack.i.b16 %v218, %v218
        %v229 = vlaneseq
        %v230 = vshrl.u32 %v229, 7
        %v231 = vsub.s32 0, %v230
        %v232 = vrot.slane %v227, %v231
        %v234 = vpack.i.b16 %v225, %v225
        %v236 = vlaneseq
        %v237 = vshrl.u32 %v236, 7
        %v238 = vsub.s32 0, %v237
        %v239 = vrot.slane %v234, %v238
        %v242 = vcombine.low %v232, %v239
        %v244 = vunpack.c.l.s4 1983009808
        %v245 = vunpack.c.0.s8 %v244
        %v246 = vlaneseq
        %v247 = vshrl.u32 %v246, 7
        %v248 = vsub.s32 %v245, %v247
        %v249 = vrot.slane %v242, %v248
        %v251 = vmul.bf16 %v202, %v249
        %v254 = vunpack.c.l.s4 1983009808
        %v255 = vunpack.c.0.s8 %v254
        %v256 = vlaneseq
        %v257 = vshrl.u32 %v256, 7
        %v258 = vsub.s32 %v255, %v257
        %v259 = vrot.slane %v251, %v258
        %261 = vst [vmem:[#allocation2] sm:$0x33] %v259
        %v263 = vcombine.low %v202, %v202
        %v265 = vunpack.c.l.s4 1983009808
        %v266 = vunpack.c.0.s8 %v265
        %v267 = vlaneseq
        %v268 = vshrl.u32 %v267, 7
        %v269 = vsub.s32 %v266, %v268
        %v270 = vrot.slane %v263, %v269
        %v272 = vunpack.c.l.s4 1983009808
        %v273 = vunpack.c.0.s8 %v272
        %v274 = vlaneseq
        %v275 = vshrl.u32 %v274, 7
        %v276 = vsub.s32 %v273, %v275
        %v277 = vrot.slane %v202, %v276
        %278 = vrot.lane.b32.xlu0 %v270, 127
        %v279 = vpop.permute.xlu0 %278
        %280 = vrot.lane.b32.xlu0 %v277, 127
        %v281 = vpop.permute.xlu0 %280
        %v282 = vrot.slane %v279, 4
        %v283 = vrot.slane %v281, 4
        %vm284 = vcmask 1043456
        %v285 = vsel %vm284, %v282, %v283
        %vm286 = vcmask 1039360
        %v287 = vsel %vm286, %v279, %v285
        %289 = vst [vmem:[#allocation2] sm:$0xcc] %v287
        %v290 = vshrl.u32 %v218, 16
        %v291 = vpack.i.b16 %v290, %v290
        %v293 = vlaneseq
        %v294 = vshrl.u32 %v293, 7
        %v295 = vsub.s32 0, %v294
        %v296 = vrot.slane %v291, %v295
        %v297 = vshrl.u32 %v225, 16
        %v298 = vpack.i.b16 %v297, %v297
        %v300 = vlaneseq
        %v301 = vshrl.u32 %v300, 7
        %v302 = vsub.s32 0, %v301
        %v303 = vrot.slane %v298, %v302
        %v306 = vcombine.low %v296, %v303
        %v308 = vunpack.c.l.s4 1983009808
        %v309 = vunpack.c.0.s8 %v308
        %v310 = vlaneseq
        %v311 = vshrl.u32 %v310, 7
        %v312 = vsub.s32 %v309, %v311
        %v313 = vrot.slane %v306, %v312
        %314 = vrot.lane.b32.xlu0 %v313, 2
        %v315 = vpop.permute.xlu0 %314
        %v316 = vrot.slane %v315, 6
        %vm317 = vcmask 15360
        %v318 = vsel %vm317, %v316, %v315
        %v320 = vmul.bf16 %v202, %v318
        %v322 = vcombine.high %v320, %v320
        %v324 = vunpack.c.l.s4 1983009808
        %v325 = vunpack.c.0.s8 %v324
        %v326 = vlaneseq
        %v327 = vshrl.u32 %v326, 7
        %v328 = vsub.s32 %v325, %v327
        %v329 = vrot.slane %v320, %v328
        %v331 = vunpack.c.l.s4 1983009808
        %v332 = vunpack.c.0.s8 %v331
        %v333 = vlaneseq
        %v334 = vshrl.u32 %v333, 7
        %v335 = vsub.s32 %v332, %v334
        %v336 = vrot.slane %v322, %v335
        %337 = vrot.lane.b32.xlu0 %v329, 126
        %v338 = vpop.permute.xlu0 %337
        %339 = vrot.lane.b32.xlu0 %v336, 126
        %v340 = vpop.permute.xlu0 %339
        %v341 = vrot.slane %v338, 4
        %v342 = vrot.slane %v340, 4
        %v343 = vsel %vm284, %v341, %v342
        %vm344 = vcmask 1031168
        %v345 = vsel %vm344, %v338, %v343
        %347 = vst [vmem:[#allocation2 + $0x8] sm:$0x33] %v345
        %348 = vrot.lane.b32.xlu0 %v249, 16
        %v349 = vpop.permute.xlu0 %348
        %v350 = vrot.slane %v349, 6
        %vm351 = vcmask 130048
        %v352 = vsel %vm351, %v350, %v349
        %v354 = vmul.bf16 %v202, %v352
        %v356 = vcombine.low %v354, %v354
        %v358 = vunpack.c.l.s4 1983009808
        %v359 = vunpack.c.0.s8 %v358
        %v360 = vlaneseq
        %v361 = vshrl.u32 %v360, 7
        %v362 = vsub.s32 %v359, %v361
        %v363 = vrot.slane %v356, %v362
        %v365 = vunpack.c.l.s4 1983009808
        %v366 = vunpack.c.0.s8 %v365
        %v367 = vlaneseq
        %v368 = vshrl.u32 %v367, 7
        %v369 = vsub.s32 %v366, %v368
        %v370 = vrot.slane %v354, %v369
        %371 = vrot.lane.b32.xlu0 %v363, 112
        %v372 = vpop.permute.xlu0 %371
        %373 = vrot.lane.b32.xlu0 %v370, 112
        %v374 = vpop.permute.xlu0 %373
        %v375 = vrot.slane %v372, 4
        %v376 = vrot.slane %v374, 4
        %v377 = vsel %vm284, %v375, %v376
        %vm378 = vcmask 916480
        %v379 = vsel %vm378, %v372, %v377
        %381 = vst [vmem:[#allocation2 + $0x8] sm:$0xcc] %v379
        %v382 = vcombine.high %v202, %v202
        %v384 = vunpack.c.l.s4 1983009808
        %v385 = vunpack.c.0.s8 %v384
        %v386 = vlaneseq
        %v387 = vshrl.u32 %v386, 7
        %v388 = vsub.s32 %v385, %v387
        %v389 = vrot.slane %v382, %v388
        %390 = vrot.lane.b32.xlu0 %v277, 111
        %v391 = vpop.permute.xlu0 %390
        %392 = vrot.lane.b32.xlu0 %v389, 111
        %v393 = vpop.permute.xlu0 %392
        %v394 = vrot.slane %v391, 4
        %v395 = vrot.slane %v393, 4
        %v396 = vsel %vm284, %v394, %v395
        %vm397 = vcmask 908288
        %v398 = vsel %vm397, %v391, %v396
        %400 = vst [vmem:[#allocation2 + $0x10] sm:$0x33] %v398
        %401 = vrot.lane.b32.xlu0 %v313, 18
        %v402 = vpop.permute.xlu0 %401
        %v403 = vrot.slane %v402, 6
        %vm404 = vcmask 146432
        %v405 = vsel %vm404, %v403, %v402
        %v407 = vmul.bf16 %v202, %v405
        %v409 = vcombine.low %v407, %v407
        %v411 = vunpack.c.l.s4 1983009808
        %v412 = vunpack.c.0.s8 %v411
        %v413 = vlaneseq
        %v414 = vshrl.u32 %v413, 7
        %v415 = vsub.s32 %v412, %v414
        %v416 = vrot.slane %v409, %v415
        %v418 = vunpack.c.l.s4 1983009808
        %v419 = vunpack.c.0.s8 %v418
        %v420 = vlaneseq
        %v421 = vshrl.u32 %v420, 7
        %v422 = vsub.s32 %v419, %v421
        %v423 = vrot.slane %v407, %v422
        %424 = vrot.lane.b32.xlu0 %v416, 110
        %v425 = vpop.permute.xlu0 %424
        %426 = vrot.lane.b32.xlu0 %v423, 110
        %v427 = vpop.permute.xlu0 %426
        %v428 = vrot.slane %v425, 4
        %v429 = vrot.slane %v427, 4
        %v430 = vsel %vm284, %v428, %v429
        %vm431 = vcmask 900096
        %v432 = vsel %vm431, %v425, %v430
        %434 = vst [vmem:[#allocation2 + $0x10] sm:$0xcc] %v432
        %435 = vrot.lane.b32.xlu0 %v249, 32
        %v436 = vpop.permute.xlu0 %435
        %v437 = vrot.slane %v436, 6
        %vm438 = vcmask 261120
        %v439 = vsel %vm438, %v437, %v436
        %v441 = vmul.bf16 %v202, %v439
        %v443 = vcombine.high %v441, %v441
        %v445 = vunpack.c.l.s4 1983009808
        %v446 = vunpack.c.0.s8 %v445
        %v447 = vlaneseq
        %v448 = vshrl.u32 %v447, 7
        %v449 = vsub.s32 %v446, %v448
        %v450 = vrot.slane %v441, %v449
        %v452 = vunpack.c.l.s4 1983009808
        %v453 = vunpack.c.0.s8 %v452
        %v454 = vlaneseq
        %v455 = vshrl.u32 %v454, 7
        %v456 = vsub.s32 %v453, %v455
        %v457 = vrot.slane %v443, %v456
        %458 = vrot.lane.b32.xlu0 %v450, 96
        %v459 = vpop.permute.xlu0 %458
        %460 = vrot.lane.b32.xlu0 %v457, 96
        %v461 = vpop.permute.xlu0 %460
        %v462 = vrot.slane %v459, 4
        %v463 = vrot.slane %v461, 4
        %v464 = vsel %vm284, %v462, %v463
        %vm465 = vcmask 785408
        %v466 = vsel %vm465, %v459, %v464
        %468 = vst [vmem:[#allocation2 + $0x18] sm:$0x33] %v466
        %469 = vrot.lane.b32.xlu0 %v270, 95
        %v470 = vpop.permute.xlu0 %469
        %471 = vrot.lane.b32.xlu0 %v277, 95
        %v472 = vpop.permute.xlu0 %471
        %v473 = vrot.slane %v470, 4
        %v474 = vrot.slane %v472, 4
        %v475 = vsel %vm284, %v473, %v474
        %vm476 = vcmask 777216
        %v477 = vsel %vm476, %v470, %v475
        %479 = vst [vmem:[#allocation2 + $0x18] sm:$0xcc] %v477
        %480 = vrot.lane.b32.xlu0 %v313, 34
        %v481 = vpop.permute.xlu0 %480
        %v482 = vrot.slane %v481, 6
        %vm483 = vcmask 277504
        %v484 = vsel %vm483, %v482, %v481
        %v486 = vmul.bf16 %v202, %v484
        %v488 = vcombine.high %v486, %v486
        %v490 = vunpack.c.l.s4 1983009808
        %v491 = vunpack.c.0.s8 %v490
        %v492 = vlaneseq
        %v493 = vshrl.u32 %v492, 7
        %v494 = vsub.s32 %v491, %v493
        %v495 = vrot.slane %v486, %v494
        %v497 = vunpack.c.l.s4 1983009808
        %v498 = vunpack.c.0.s8 %v497
        %v499 = vlaneseq
        %v500 = vshrl.u32 %v499, 7
        %v501 = vsub.s32 %v498, %v500
        %v502 = vrot.slane %v488, %v501
        %503 = vrot.lane.b32.xlu0 %v495, 94
        %v504 = vpop.permute.xlu0 %503
        %505 = vrot.lane.b32.xlu0 %v502, 94
        %v506 = vpop.permute.xlu0 %505
        %v507 = vrot.slane %v504, 4
        %v508 = vrot.slane %v506, 4
        %v509 = vsel %vm284, %v507, %v508
        %vm510 = vcmask 769024
        %v511 = vsel %vm510, %v504, %v509
        %513 = vst [vmem:[#allocation2 + $0x20] sm:$0x33] %v511
        %v514 = vld [vmem:[#allocation6] sm:$0xf]
        %v515 = vld [vmem:[#allocation2] sm:$0xff]
        %v516 = vld [vmem:[#allocation2 + $0x8] sm:$0xff]
        %v517 = vld [vmem:[#allocation2 + $0x10] sm:$0xff]
        %v518 = vld [vmem:[#allocation2 + $0x18] sm:$0xff]
        %v519 = vld [vmem:[#allocation2 + $0x20] sm:$0x33]
        %v525 = vunpack.c.l.b16 %v515
        %v526 = vunpack.c.h.b16 %v515
        %v527 = vunpack.c.l.b16 %v516
        %v528 = vunpack.c.h.b16 %v516
        %v529 = vunpack.c.l.b16 %v517
        %v530 = vunpack.c.h.b16 %v517
        %v531 = vunpack.c.l.b16 %v518
        %v532 = vunpack.c.h.b16 %v518
        %v533 = vunpack.c.l.b16 %v519
        %v534 = vunpack.c.h.b16 %v519
        %v535 = vpack.c.b16 %v527, %v525
        %v536 = vpack.c.b16 %v528, %v526
        %v537 = vpack.c.b16 %v531, %v529
        %v538 = vpack.c.b16 %v532, %v530
        %v539 = vpack.c.b16 %v533, %v533
        %v540 = vpack.c.b16 %v534, %v534
        %vm545 = vcmask 293888
        %v547 = vsel %vm545, %v514, 0
        %vm549 = vcmask 1041408
        %v551 = vsel %vm549, %v539, 0
        %v554 = vsel %vm549, %v540, 0
        %556 = vmatprep.subr.bf16.mxu0 %v536
        %557 = vmatpush1.bf16.msra.mxu0 %v535
        %558 = vmatprep.subr.bf16.mxu0 %v538
        %559 = vmatpush1.bf16.msra.mxu0 %v537
        %560 = vmatprep.subr.bf16.mxu0 %v554
        %561 = vmatpush1.bf16.msra.mxu0 %v551
        %562 = vmatprep.subr.bf16.mxu0 0
        %563 = vmatpush1.bf16.msra.mxu0 0
        %564 = vmatprep.subr.bf16.mxu0 0
        %565 = vmatpush1.bf16.msra.mxu0 0
        %566 = vmatprep.subr.bf16.mxu0 0
        %567 = vmatpush1.bf16.msra.mxu0 0
        %568 = vmatprep.subr.bf16.mxu0 0
        %569 = vmatpush1.bf16.msra.mxu0 0
        %570 = vmatprep.subr.bf16.mxu0 0
        %571 = vmatpush1.bf16.msra.mxu0 0
        %572 = vmatprep.subr.bf16.mxu0 0
        %573 = vmatpush1.bf16.msra.mxu0 0
        %574 = vmatprep.subr.bf16.mxu0 0
        %575 = vmatpush1.bf16.msra.mxu0 0
        %576 = vmatprep.subr.bf16.mxu0 0
        %577 = vmatpush1.bf16.msra.mxu0 0
        %578 = vmatprep.subr.bf16.mxu0 0
        %579 = vmatpush1.bf16.msra.mxu0 0
        %580 = vmatprep.subr.bf16.mxu0 0
        %581 = vmatpush1.bf16.msra.mxu0 0
        %582 = vmatprep.subr.bf16.mxu0 0
        %583 = vmatpush1.bf16.msra.mxu0 0
        %584 = vmatprep.subr.bf16.mxu0 0
        %585 = vmatpush1.bf16.msra.mxu0 0
        %586 = vmatprep.subr.bf16.mxu0 0
        %587 = vmatpush1.bf16.msra.mxu0 0
        %588 = vmatprep.mubr.bf16.mxu0 0
        %589 = vmatmul.mubr.bf16.gmra.mrb[0].mxu0 %v547
        %v590 = vpop.f32.mrb[0].mxu0
        %v591 = vadd.f32 0.0, %v590
        %v592 = vpop.f32.mrb[0].mxu0
        %v593 = vadd.f32 0.0, %v592
        %v594 = vpop.f32.mrb[0].mxu0
        %v595 = vpop.f32.mrb[0].mxu0
        %596 = vdwg.mxu0
        %v597 = vadd.f32 %v591, %v593
        %598 = vadd.xlane.f32.xlu0 %v597
        %v599 = vpop.xlane.xlu0 %598
        %v600 = vrcp.pop 256.0
        %v601 = vmul.f32 %v599, %v600
        %v602 = vmul.f32 %v591, %v591
        %v603 = vmul.f32 %v593, %v593
        %v604 = vadd.f32 %v602, %v603
        %605 = vadd.xlane.f32.xlu0 %v604
        %v606 = vpop.xlane.xlu0 %605
        %v607 = vmul.f32 %v606, %v600
        %v608 = vmul.f32 %v601, %v601
        %v609 = vsub.f32 %v607, %v608
        %v610 = vsub.f32 %v591, %v601
        %v611 = vsub.f32 %v593, %v601
        %v612 = vadd.f32 %v609, 1e-05
        %v613 = vrsqrt.pop %v612
        %v614 = vmul.f32 %v610, %v613
        %v615 = vmul.f32 %v611, %v613
        %v616 = vmul.f32 %v614, 0.5
        %v617 = vmul.f32 %v615, 0.5
        %v618 = vmul.f32 %v614, 0.70710677
        %v619 = vmul.f32 %v615, 0.70710677
        %v620 = verf.f32.pop %v618
        %v621 = verf.f32.pop %v619
        %v622 = vadd.f32 %v620, 1.0
        %v623 = vadd.f32 %v621, 1.0
        %v624 = vmul.f32 %v616, %v622
        %v625 = vmul.f32 %v617, %v623
        %626 = vst [vmem:[%s199] sm:$0xff] %v624
        %627 = vst [vmem:[%s199 + $0x8] sm:$0xff] %v625
        %s628 = sand.u32 %s97, 1
        %s629 = scalar_lea.sflag [#allocation5], %s628
        %s630 = sand.u32 %s97, 1
        %s631 = smul.addr %s630, 16
        %s632 = scalar_lea.vmem [#allocation8], %s631
        // Predicated region
        $region41: #{tpu_custom_call.1} parent=31 // pred_check
          %p633 = pneg %p107
        $region42: #{tpu_custom_call.1} parent=31 // pred_check_branch
          %635 = sbr.rel (%p633) target = $region44
        $region43: #{tpu_custom_call.1} parent=31 // pred_region
          %s637 = ssub.s32 256, 256
          %638 = vsyncadd %s629, %s637
          %s639 = smul.addr %s21, 2
          %s640 = smul.addr %s639, 128
          %s641 = scalar_lea.hbm %s3, %s640
          %s643 = sshll.u32 %s632, 4
          %s644 = int_to_ptr.vmem [resolvable:$true] %s643
          %646 = dma.vmem_to_hbm [thread:$0]  %s644, 256, %s641, %s629
        $region44: #{tpu_custom_call.1} parent=31 // pred_fallthru
          _
      $region32: #{tpu_custom_call.1} parent=5 // pred_fallthru
        _
      %p647 = scmp.le.s32.totalorder 2, %s16
      // Predicated region
      $region45: #{tpu_custom_call.1} parent=5 // pred_check
        %p648 = pneg %p647
      $region46: #{tpu_custom_call.1} parent=5 // pred_check_branch
        %650 = sbr.rel (%p648) target = $region48
      $region47: #{tpu_custom_call.1} parent=5 // pred_region
        %s651 = ssub.s32 %s16, 2
        // Predicated region
        $region49: #{tpu_custom_call.1} parent=47 // pred_check
          %p652 = pneg %p113
        $region50: #{tpu_custom_call.1} parent=47 // pred_check_branch
          %654 = sbr.rel (%p652) target = $region52
        $region51: #{tpu_custom_call.1} parent=47 // pred_region
          %s655 = sand.u32 %s98, 1
          %s656 = scalar_lea.sflag [#allocation5], %s655
          %s657 = sand.u32 %s98, 1
          %s658 = smul.addr %s657, 16
          %s659 = scalar_lea.vmem [#allocation8], %s658
          %660 = dma.done %s656, 256
        $region52: #{tpu_custom_call.1} parent=47 // pred_fallthru
          _
      $region48: #{tpu_custom_call.1} parent=5 // pred_fallthru
        _
    $region6: #{tpu_custom_call.1} parent=1 // loop_footer
      %s20 = sadd.s32 1, %s16
    $region7: #{tpu_custom_call.1} parent=1 // loop_footer_branch
      %15 = sbr.rel target = $region3
    $region8: #{tpu_custom_call.1} parent=1 // loop_exit
      _
    %661 = vsyncpa [#allocation4], 1
    %s662 = scalar_lea.sflag [#allocation4], 1
    %663 = vsyncpa %s662, 1
    %664 = vsyncpa [#allocation7], 1
    %665 = vsyncpa [#allocation5], 1
    %s666 = scalar_lea.sflag [#allocation5], 1
    %667 = vsyncpa %s666, 1

</llo_original>
